<compile_context>
chip_gen: v7x
topology: tpu7x:2x2x1
jax: 0.10.0
libtpu: 0.0.40
codegen_flags: <defaults>
</compile_context>

<pallas_src>
import functools

import jax
import jax.numpy as jnp
from jax.experimental import pallas as pl
from jax.experimental.pallas import tpu as pltpu

LEAKY_SLOPE = 0.2


def _leaky_relu(x, slope=LEAKY_SLOPE):
    return jnp.where(x > 0, x, slope * x)


def _round_up(n, m):
    return ((n + m - 1) // m) * m


def prsnet_mlp_kernel(x_ref, w0_ref, b0_ref, w1_ref, b1_ref, w2_ref, b2_ref, o_ref):
    # x_ref: (TB, 64) bf16 | wN_ref: (out, in) bf16 | bN_ref: (out, 1) f32
    x = x_ref[...]

    # layer 0: h^T = W0 @ x^T  -> (32, TB), f32 accumulate on the MXU
    # (contract both trailing dims: the classic "A @ B^T" pattern).
    h = jax.lax.dot_general(
        w0_ref[...], x,
        dimension_numbers=(((1,), (1,)), ((), ())),
        preferred_element_type=jnp.float32,
    )
    h = _leaky_relu(h + b0_ref[...])

    # layer 1: (16, 32) @ (32, TB) -> (16, TB)
    h = jax.lax.dot_general(
        w1_ref[...], h.astype(jnp.bfloat16),
        dimension_numbers=(((1,), (0,)), ((), ())),
        preferred_element_type=jnp.float32,
    )
    h = _leaky_relu(h + b1_ref[...])

    # layer 2: (4, 16) @ (16, TB) -> (4, TB)
    out = jax.lax.dot_general(
        w2_ref[...], h.astype(jnp.bfloat16),
        dimension_numbers=(((1,), (0,)), ((), ())),
        preferred_element_type=jnp.float32,
    )
    o_ref[...] = (out + b2_ref[...]).astype(o_ref.dtype)


@functools.partial(jax.jit, static_argnames=("tb",))
def prsnet_quaternion_predictor(features, params, *, tb=4096):
    """features: (B, 64) float32.
    params: PyTorch-layout weights wN (out_features, in_features), bN (out_features,)."""
    B, F = features.shape
    assert F == 64, F

    # Batch tile: lane-dense multiple of 128 for big B, otherwise one full
    # tile rounded up to the sublane granularity (8).
    if B >= tb:
        TB = tb
    else:
        TB = max(8, _round_up(B, 8))
    B_pad = _round_up(B, TB)

    x = features.astype(jnp.bfloat16)
    if B_pad != B:
        x = jnp.pad(x, ((0, B_pad - B), (0, 0)))

    w0 = params["w0"].astype(jnp.bfloat16)                  # (32, 64)
    w1 = params["w1"].astype(jnp.bfloat16)                  # (16, 32)
    w2 = params["w2"].astype(jnp.bfloat16)                  # (4, 16)
    b0 = params["b0"].reshape(-1, 1).astype(jnp.float32)    # (32, 1)
    b1 = params["b1"].reshape(-1, 1).astype(jnp.float32)    # (16, 1)
    b2 = params["b2"].reshape(-1, 1).astype(jnp.float32)    # (4, 1)

    const = lambda arr: pl.BlockSpec(arr.shape, lambda i: (0, 0))  # VMEM-resident

    out_t = pl.pallas_call(
        prsnet_mlp_kernel,
        out_shape=jax.ShapeDtypeStruct((4, B_pad), jnp.float32),
        grid=(B_pad // TB,),
        in_specs=[
            pl.BlockSpec((TB, 64), lambda i: (i, 0)),   # batch-tiled feature stream
            const(w0), const(b0),
            const(w1), const(b1),
            const(w2), const(b2),
        ],
        out_specs=pl.BlockSpec((4, TB), lambda i: (0, i)),
        compiler_params=pltpu.CompilerParams(
            dimension_semantics=("parallel",)),
    )(x, w0, b0, w1, b1, w2, b2)

    # (4, B_pad) lane-dense kernel output -> (B, 4) module output.
    return out_t.T[:B]


def init_params():
    """Deterministic parameter init matching nn.Linear defaults (W stored (out, in))."""
    key = jax.random.PRNGKey(0)
    ks = jax.random.split(key, 6)

    def linear(kw, kb, fan_in, fan_out):
        bound = 1.0 / jnp.sqrt(float(fan_in))
        w = jax.random.uniform(kw, (fan_out, fan_in), jnp.float32, -bound, bound)
        b = jax.random.uniform(kb, (fan_out,), jnp.float32, -bound, bound)
        return w, b

    w0, b0 = linear(ks[0], ks[1], 64, 32)
    w1, b1 = linear(ks[2], ks[3], 32, 16)
    w2, b2 = linear(ks[4], ks[5], 16, 4)
    return {"w0": w0, "b0": b0, "w1": w1, "b1": b1, "w2": w2, "b2": b2}


def reference_forward(features, params):
    """Pure-JAX reference with the same bf16 operand quantization as the kernel."""
    q = lambda a: a.astype(jnp.bfloat16).astype(jnp.float32)
    h = q(features) @ q(params["w0"]).T + params["b0"]
    h = jnp.where(h > 0, h, LEAKY_SLOPE * h)
    h = q(h) @ q(params["w1"]).T + params["b1"]
    h = jnp.where(h > 0, h, LEAKY_SLOPE * h)
    return q(h) @ q(params["w2"]).T + params["b2"]


if __name__ == "__main__":
    params = init_params()

    # Small case from the module spec (B = 8): single full-batch tile.
    B = 8
    features = jax.random.normal(jax.random.PRNGKey(0), (B, 64), jnp.float32)
    out = jax.block_until_ready(prsnet_quaternion_predictor(features, params))
    ref = reference_forward(features, params)
    assert out.shape == (B, 4), out.shape
    assert jnp.allclose(out, ref, atol=1e-3, rtol=1e-3), float(jnp.max(jnp.abs(out - ref)))

    # Multi-tile grid path (batch padding + 3 pipelined grid steps).
    B2 = 300
    features2 = jax.random.normal(jax.random.PRNGKey(1), (B2, 64), jnp.float32)
    out2 = jax.block_until_ready(prsnet_quaternion_predictor(features2, params, tb=128))
    ref2 = reference_forward(features2, params)
    assert out2.shape == (B2, 4), out2.shape
    assert jnp.allclose(out2, ref2, atol=1e-3, rtol=1e-3), float(jnp.max(jnp.abs(out2 - ref2)))

    print("KERNEL_OK")
</pallas_src>

<mosaic_0001>
module attributes {stable_mosaic.version = 11 : i64} {
  func.func @prsnet_mlp_kernel(%arg0: i32, %arg1: memref<8x64xbf16, #tpu.memory_space<vmem>>, %arg2: memref<32x64xbf16, #tpu.memory_space<vmem>>, %arg3: memref<32x1xf32, #tpu.memory_space<vmem>>, %arg4: memref<16x32xbf16, #tpu.memory_space<vmem>>, %arg5: memref<16x1xf32, #tpu.memory_space<vmem>>, %arg6: memref<4x16xbf16, #tpu.memory_space<vmem>>, %arg7: memref<4x1xf32, #tpu.memory_space<vmem>>, %arg8: memref<4x8xf32, #tpu.memory_space<vmem>>) attributes {dimension_semantics = [#tpu.dimension_semantics<parallel>], iteration_bounds = array<i64: 1>, scalar_prefetch = 0 : i64, scratch_operands = 0 : i64, tpu.core_type = #tpu.core_type<tc>, window_params = [{transform_indices = @transform_0, window_bounds = array<i64: 8, 64>}, {pipeline_mode = #tpu.pipeline_mode<synchronous>, transform_indices = @transform_1, window_bounds = array<i64: 32, 64>}, {pipeline_mode = #tpu.pipeline_mode<synchronous>, transform_indices = @transform_2, window_bounds = array<i64: 32, 1>}, {pipeline_mode = #tpu.pipeline_mode<synchronous>, transform_indices = @transform_3, window_bounds = array<i64: 16, 32>}, {pipeline_mode = #tpu.pipeline_mode<synchronous>, transform_indices = @transform_4, window_bounds = array<i64: 16, 1>}, {pipeline_mode = #tpu.pipeline_mode<synchronous>, transform_indices = @transform_5, window_bounds = array<i64: 4, 16>}, {pipeline_mode = #tpu.pipeline_mode<synchronous>, transform_indices = @transform_6, window_bounds = array<i64: 4, 1>}, {transform_indices = @transform_7, window_bounds = array<i64: 4, 8>}]} {
    %c0 = arith.constant 0 : index
    %c0_0 = arith.constant 0 : index
    %0 = vector.load %arg1[%c0, %c0_0] : memref<8x64xbf16, #tpu.memory_space<vmem>>, vector<8x64xbf16>
    %c0_1 = arith.constant 0 : index
    %c0_2 = arith.constant 0 : index
    %1 = vector.load %arg2[%c0_1, %c0_2] : memref<32x64xbf16, #tpu.memory_space<vmem>>, vector<32x64xbf16>
    %cst = arith.constant dense<0.000000e+00> : vector<32x8xf32>
    %2 = tpu.matmul %1, %0, %cst {dimension_numbers = #tpu.dot_dimension_numbers<[1], [1], [0], [0], [0, 0, 1, 0], [], []>} : vector<32x64xbf16>, vector<8x64xbf16>, vector<32x8xf32> -> vector<32x8xf32>
    %c0_3 = arith.constant 0 : index
    %c0_4 = arith.constant 0 : index
    %3 = vector.load %arg3[%c0_3, %c0_4] : memref<32x1xf32, #tpu.memory_space<vmem>>, vector<32x1xf32>
    %4 = vector.broadcast %3 : vector<32x1xf32> to vector<32x8xf32>
    %5 = arith.addf %2, %4 : vector<32x8xf32>
    %cst_5 = arith.constant 0.000000e+00 : f32
    %6 = vector.broadcast %cst_5 : f32 to vector<32x8xf32>
    %7 = arith.cmpf ogt, %5, %6 : vector<32x8xf32>
    %cst_6 = arith.constant 2.000000e-01 : f32
    %8 = vector.broadcast %cst_6 : f32 to vector<32x8xf32>
    %9 = arith.mulf %8, %5 : vector<32x8xf32>
    %10 = arith.select %7, %5, %9 : vector<32x8xi1>, vector<32x8xf32>
    %c0_7 = arith.constant 0 : index
    %c0_8 = arith.constant 0 : index
    %11 = vector.load %arg4[%c0_7, %c0_8] : memref<16x32xbf16, #tpu.memory_space<vmem>>, vector<16x32xbf16>
    %12 = arith.truncf %10 : vector<32x8xf32> to vector<32x8xbf16>
    %cst_9 = arith.constant dense<0.000000e+00> : vector<16x8xf32>
    %13 = tpu.matmul %11, %12, %cst_9 {dimension_numbers = #tpu.dot_dimension_numbers<[1], [0], [0], [1], [0, 0, 1, 1], [], []>} : vector<16x32xbf16>, vector<32x8xbf16>, vector<16x8xf32> -> vector<16x8xf32>
    %c0_10 = arith.constant 0 : index
    %c0_11 = arith.constant 0 : index
    %14 = vector.load %arg5[%c0_10, %c0_11] : memref<16x1xf32, #tpu.memory_space<vmem>>, vector<16x1xf32>
    %15 = vector.broadcast %14 : vector<16x1xf32> to vector<16x8xf32>
    %16 = arith.addf %13, %15 : vector<16x8xf32>
    %cst_12 = arith.constant 0.000000e+00 : f32
    %17 = vector.broadcast %cst_12 : f32 to vector<16x8xf32>
    %18 = arith.cmpf ogt, %16, %17 : vector<16x8xf32>
    %cst_13 = arith.constant 2.000000e-01 : f32
    %19 = vector.broadcast %cst_13 : f32 to vector<16x8xf32>
    %20 = arith.mulf %19, %16 : vector<16x8xf32>
    %21 = arith.select %18, %16, %20 : vector<16x8xi1>, vector<16x8xf32>
    %c0_14 = arith.constant 0 : index
    %c0_15 = arith.constant 0 : index
    %22 = vector.load %arg6[%c0_14, %c0_15] : memref<4x16xbf16, #tpu.memory_space<vmem>>, vector<4x16xbf16>
    %23 = arith.truncf %21 : vector<16x8xf32> to vector<16x8xbf16>
    %cst_16 = arith.constant dense<0.000000e+00> : vector<4x8xf32>
    %24 = tpu.matmul %22, %23, %cst_16 {dimension_numbers = #tpu.dot_dimension_numbers<[1], [0], [0], [1], [0, 0, 1, 1], [], []>} : vector<4x16xbf16>, vector<16x8xbf16>, vector<4x8xf32> -> vector<4x8xf32>
    %c0_17 = arith.constant 0 : index
    %c0_18 = arith.constant 0 : index
    %25 = vector.load %arg7[%c0_17, %c0_18] : memref<4x1xf32, #tpu.memory_space<vmem>>, vector<4x1xf32>
    %26 = vector.broadcast %25 : vector<4x1xf32> to vector<4x8xf32>
    %27 = arith.addf %24, %26 : vector<4x8xf32>
    %c0_19 = arith.constant 0 : index
    %c0_20 = arith.constant 0 : index
    %28 = vector.load %arg8[%c0_19, %c0_20] : memref<4x8xf32, #tpu.memory_space<vmem>>, vector<4x8xf32>
    tpu.vector_store %arg8[%c0_19, %c0_20], %27 {strides = array<i32>} : memref<4x8xf32, #tpu.memory_space<vmem>>, vector<4x8xf32>,
    return
  }
  func.func @transform_0(%arg0: i32) -> (i32, i32) {
    %c0_i32 = arith.constant 0 : i32
    %c0_i32_0 = arith.constant 0 : i32
    return %arg0, %c0_i32 : i32, i32
  }
  func.func @transform_1(%arg0: i32) -> (i32, i32) {
    %c0_i32 = arith.constant 0 : i32
    %c0_i32_0 = arith.constant 0 : i32
    %c0_i32_1 = arith.constant 0 : i32
    return %c0_i32, %c0_i32_0 : i32, i32
  }
  func.func @transform_2(%arg0: i32) -> (i32, i32) {
    %c0_i32 = arith.constant 0 : i32
    %c0_i32_0 = arith.constant 0 : i32
    %c0_i32_1 = arith.constant 0 : i32
    return %c0_i32, %c0_i32_0 : i32, i32
  }
  func.func @transform_3(%arg0: i32) -> (i32, i32) {
    %c0_i32 = arith.constant 0 : i32
    %c0_i32_0 = arith.constant 0 : i32
    %c0_i32_1 = arith.constant 0 : i32
    return %c0_i32, %c0_i32_0 : i32, i32
  }
  func.func @transform_4(%arg0: i32) -> (i32, i32) {
    %c0_i32 = arith.constant 0 : i32
    %c0_i32_0 = arith.constant 0 : i32
    %c0_i32_1 = arith.constant 0 : i32
    return %c0_i32, %c0_i32_0 : i32, i32
  }
  func.func @transform_5(%arg0: i32) -> (i32, i32) {
    %c0_i32 = arith.constant 0 : i32
    %c0_i32_0 = arith.constant 0 : i32
    %c0_i32_1 = arith.constant 0 : i32
    return %c0_i32, %c0_i32_0 : i32, i32
  }
  func.func @transform_6(%arg0: i32) -> (i32, i32) {
    %c0_i32 = arith.constant 0 : i32
    %c0_i32_0 = arith.constant 0 : i32
    %c0_i32_1 = arith.constant 0 : i32
    return %c0_i32, %c0_i32_0 : i32, i32
  }
  func.func @transform_7(%arg0: i32) -> (i32, i32) {
    %c0_i32 = arith.constant 0 : i32
    %c0_i32_0 = arith.constant 0 : i32
    return %c0_i32, %arg0 : i32, i32
  }
}

</mosaic_0001>

<llo_original>
// kernel: prsnet_quaternion_predictor.1
$region0: #{prsnet_quaternion_predictor.1}
  #allocation0 [shape = 'u32[]', space=smem, size = 0x4, offset = 0x4, fixed_abs, tag = 'smem constant byte address 0x4 - core index']
  #allocation1 [shape = 'u32[144,128]{1,0:T(1,128)}', space=vmem, size = 0x12000, scoped, tag = 'internal scratch']
  %s0 = inlined_call_operand.vmem [shape: bf16[8,64], index: 0, kind: input, shape index: {}]
  %s1 = inlined_call_operand.vmem [shape: bf16[32,64], index: 1, kind: input, shape index: {}]
  %s2 = inlined_call_operand.vmem [shape: f32[32,1], index: 2, kind: input, shape index: {}]
  %s3 = inlined_call_operand.vmem [shape: bf16[16,32], index: 3, kind: input, shape index: {}]
  %s4 = inlined_call_operand.vmem [shape: f32[16,1], index: 4, kind: input, shape index: {}]
  %s5 = inlined_call_operand.vmem [shape: bf16[4,16], index: 5, kind: input, shape index: {}]
  %s6 = inlined_call_operand.vmem [shape: f32[4,1], index: 6, kind: input, shape index: {}]
  %s7 = inlined_call_operand.hbm [shape: f32[4,8], index: 7, kind: output, shape index: {}]
  %s8 = sld [smem:[#allocation0]]
  $region38: #{prsnet_quaternion_predictor.1} parent=0
    _
  %s10 = ssub.s32 1, %s8
  %s11 = scalar_select 0, %s10, %s8
  $region1: #{prsnet_quaternion_predictor.1} parent=0
    #allocation2 [shape = 'u8[2048]{0}', space=vmem, size = 0x800, scoped, tag = 'output window, operand 0, single buffered']
    #allocation3 [shape = 's32[1]{0}', space=sflag, size = 0x4, scoped, tag = 'scoped memory for prsnet_quaternion_predictor.1']
    %12 = vsyncpa [#allocation3], 0
    // Predicated region
    $region2: #{prsnet_quaternion_predictor.1} parent=1 // pred_check
      _
    $region3: #{prsnet_quaternion_predictor.1} parent=1 // pred_check_branch
      %14 = sbr.rel (0) target = $region5
    $region4: #{prsnet_quaternion_predictor.1} parent=1 // pred_region
      _
    $region5: #{prsnet_quaternion_predictor.1} parent=1 // pred_fallthru
      _
    // Predicated region
    $region6: #{prsnet_quaternion_predictor.1} parent=1 // pred_check
      _
    $region7: #{prsnet_quaternion_predictor.1} parent=1 // pred_check_branch
      %16 = sbr.rel (0) target = $region9
    $region8: #{prsnet_quaternion_predictor.1} parent=1 // pred_region
      _
    $region9: #{prsnet_quaternion_predictor.1} parent=1 // pred_fallthru
      _
    // Predicated region
    $region10: #{prsnet_quaternion_predictor.1} parent=1 // pred_check
      _
    $region11: #{prsnet_quaternion_predictor.1} parent=1 // pred_check_branch
      %18 = sbr.rel (0) target = $region13
    $region12: #{prsnet_quaternion_predictor.1} parent=1 // pred_region
      _
    $region13: #{prsnet_quaternion_predictor.1} parent=1 // pred_fallthru
      _
    // Predicated region
    $region14: #{prsnet_quaternion_predictor.1} parent=1 // pred_check
      _
    $region15: #{prsnet_quaternion_predictor.1} parent=1 // pred_check_branch
      %20 = sbr.rel (0) target = $region17
    $region16: #{prsnet_quaternion_predictor.1} parent=1 // pred_region
      _
    $region17: #{prsnet_quaternion_predictor.1} parent=1 // pred_fallthru
      _
    // Predicated region
    $region18: #{prsnet_quaternion_predictor.1} parent=1 // pred_check
      _
    $region19: #{prsnet_quaternion_predictor.1} parent=1 // pred_check_branch
      %22 = sbr.rel (0) target = $region21
    $region20: #{prsnet_quaternion_predictor.1} parent=1 // pred_region
      _
    $region21: #{prsnet_quaternion_predictor.1} parent=1 // pred_fallthru
      _
    // Predicated region
    $region22: #{prsnet_quaternion_predictor.1} parent=1 // pred_check
      _
    $region23: #{prsnet_quaternion_predictor.1} parent=1 // pred_check_branch
      %24 = sbr.rel (0) target = $region25
    $region24: #{prsnet_quaternion_predictor.1} parent=1 // pred_region
      _
    $region25: #{prsnet_quaternion_predictor.1} parent=1 // pred_fallthru
      _
    // Predicated region
    $region26: #{prsnet_quaternion_predictor.1} parent=1 // pred_check
      _
    $region27: #{prsnet_quaternion_predictor.1} parent=1 // pred_check_branch
      %26 = sbr.rel (0) target = $region29
    $region28: #{prsnet_quaternion_predictor.1} parent=1 // pred_region
      _
    $region29: #{prsnet_quaternion_predictor.1} parent=1 // pred_fallthru
      _
    %v28 = vld [vmem:[%s0] sm:$0xf]
    %v29 = vld [vmem:[%s1] sm:$0xf]
    %v30 = vld [vmem:[%s1 + $0x4] sm:$0xf]
    %v31 = vld [vmem:[%s1 + $0x8] sm:$0xf]
    %v32 = vld [vmem:[%s1 + $0xc] sm:$0xf]
    %v33 = vld [vmem:[%s2] sm:$0xff]
    %v34 = vld [vmem:[%s2 + $0x8] sm:$0xff]
    %v35 = vld [vmem:[%s2 + $0x10] sm:$0xff]
    %v36 = vld [vmem:[%s2 + $0x18] sm:$0xff]
    %38 = vset.pattern.permute.xlu0 0
    %39 = vperm.xlu0 %38, %v33
    %v40 = vpop.permute.xlu0 %39
    %43 = vset.pattern.permute.xlu0 0
    %44 = vperm.xlu0 %43, %v34
    %v45 = vpop.permute.xlu0 %44
    %48 = vset.pattern.permute.xlu0 0
    %49 = vperm.xlu0 %48, %v35
    %v50 = vpop.permute.xlu0 %49
    %53 = vset.pattern.permute.xlu0 0
    %54 = vperm.xlu0 %53, %v36
    %v55 = vpop.permute.xlu0 %54
    %v61 = vunpack.c.l.b16 %v29
    %v62 = vunpack.c.l.b16 %v30
    %v63 = vunpack.c.l.b16 %v31
    %v64 = vunpack.c.l.b16 %v32
    %v65 = vpack.c.b16 %v62, %v61
    %v66 = vpack.c.b16 %v64, %v63
    %vm67 = vcmask 523264
    %v69 = vsel %vm67, %v65, 0
    %v72 = vsel %vm67, %v66, 0
    %v75 = vsel %vm67, %v28, 0
    %77 = vmatprep.subr.bf16.mxu0 0
    %78 = vmatpush1.bf16.xpose.msra.mxu0 %v75
    %79 = vmatprep.subr.bf16.mxu0 0
    %80 = vmatpush1.bf16.xpose.msra.mxu0 0
    %81 = vmatprep.subr.bf16.mxu0 0
    %82 = vmatpush1.bf16.xpose.msra.mxu0 0
    %83 = vmatprep.subr.bf16.mxu0 0
    %84 = vmatpush1.bf16.xpose.msra.mxu0 0
    %85 = vmatprep.subr.bf16.mxu0 0
    %86 = vmatpush1.bf16.xpose.msra.mxu0 0
    %87 = vmatprep.subr.bf16.mxu0 0
    %88 = vmatpush1.bf16.xpose.msra.mxu0 0
    %89 = vmatprep.subr.bf16.mxu0 0
    %90 = vmatpush1.bf16.xpose.msra.mxu0 0
    %91 = vmatprep.subr.bf16.mxu0 0
    %92 = vmatpush1.bf16.xpose.msra.mxu0 0
    %93 = vmatprep.subr.bf16.mxu0 0
    %94 = vmatpush1.bf16.xpose.msra.mxu0 0
    %95 = vmatprep.subr.bf16.mxu0 0
    %96 = vmatpush1.bf16.xpose.msra.mxu0 0
    %97 = vmatprep.subr.bf16.mxu0 0
    %98 = vmatpush1.bf16.xpose.msra.mxu0 0
    %99 = vmatprep.subr.bf16.mxu0 0
    %100 = vmatpush1.bf16.xpose.msra.mxu0 0
    %101 = vmatprep.subr.bf16.mxu0 0
    %102 = vmatpush1.bf16.xpose.msra.mxu0 0
    %103 = vmatprep.subr.bf16.mxu0 0
    %104 = vmatpush1.bf16.xpose.msra.mxu0 0
    %105 = vmatprep.subr.bf16.mxu0 0
    %106 = vmatpush1.bf16.xpose.msra.mxu0 0
    %107 = vmatprep.subr.bf16.mxu0 0
    %108 = vmatpush1.bf16.xpose.msra.mxu0 0
    %109 = vmatprep.mubr.bf16.mxu0 0
    %110 = vmatmul.mubr.bf16.gmra.mrb[0].mxu0 %v69
    %v111 = vpop.f32.mrb[0].mxu0
    %v112 = vadd.f32 %v40, %v111
    %v113 = vpop.f32.mrb[0].mxu0
    %v114 = vpop.f32.mrb[0].mxu0
    %v115 = vadd.f32 %v45, %v114
    %v116 = vpop.f32.mrb[0].mxu0
    %117 = vmatprep.mubr.bf16.mxu0 0
    %118 = vmatmul.mubr.bf16.gmra.mrb[0].mxu0 %v72
    %v119 = vpop.f32.mrb[0].mxu0
    %v120 = vadd.f32 %v50, %v119
    %v121 = vpop.f32.mrb[0].mxu0
    %v122 = vpop.f32.mrb[0].mxu0
    %v123 = vadd.f32 %v55, %v122
    %v124 = vpop.f32.mrb[0].mxu0
    %125 = vdwg.mxu0
    %vm126 = vcmp.gt.f32.partialorder %v112, 0.0
    %vm127 = vcmp.gt.f32.partialorder %v115, 0.0
    %vm128 = vcmp.gt.f32.partialorder %v120, 0.0
    %vm129 = vcmp.gt.f32.partialorder %v123, 0.0
    %v130 = vmul.f32 %v112, 0.2
    %v131 = vmul.f32 %v115, 0.2
    %v132 = vmul.f32 %v120, 0.2
    %v133 = vmul.f32 %v123, 0.2
    %v134 = vsel %vm126, %v112, %v130
    %v135 = vsel %vm127, %v115, %v131
    %v136 = vsel %vm128, %v120, %v132
    %v137 = vsel %vm129, %v123, %v133
    %v138 = vld [vmem:[%s3] sm:$0xf]
    %v139 = vld [vmem:[%s3 + $0x4] sm:$0xf]
    %v140 = vpack.c.bf16 %v135, %v134
    %v141 = vpack.c.bf16 %v137, %v136
    %v142 = vld [vmem:[%s4] sm:$0xff]
    %v143 = vld [vmem:[%s4 + $0x8] sm:$0xff]
    %145 = vset.pattern.permute.xlu0 0
    %146 = vperm.xlu0 %145, %v142
    %v147 = vpop.permute.xlu0 %146
    %150 = vset.pattern.permute.xlu0 0
    %151 = vperm.xlu0 %150, %v143
    %v152 = vpop.permute.xlu0 %151
    %v156 = vunpack.c.l.b16 %v138
    %v157 = vunpack.c.l.b16 %v139
    %v158 = vpack.c.b16 %v157, %v156
    %vm159 = vcmask 261120
    %v161 = vsel %vm159, %v158, 0
    %163 = vmatprep.subr.bf16.mxu0 0
    %164 = vmatpush1.bf16.msra.mxu0 %v140
    %165 = vmatprep.subr.bf16.mxu0 0
    %166 = vmatpush1.bf16.msra.mxu0 %v141
    %167 = vmatprep.subr.bf16.mxu0 0
    %168 = vmatpush1.bf16.msra.mxu0 0
    %169 = vmatprep.subr.bf16.mxu0 0
    %170 = vmatpush1.bf16.msra.mxu0 0
    %171 = vmatprep.subr.bf16.mxu0 0
    %172 = vmatpush1.bf16.msra.mxu0 0
    %173 = vmatprep.subr.bf16.mxu0 0
    %174 = vmatpush1.bf16.msra.mxu0 0
    %175 = vmatprep.subr.bf16.mxu0 0
    %176 = vmatpush1.bf16.msra.mxu0 0
    %177 = vmatprep.subr.bf16.mxu0 0
    %178 = vmatpush1.bf16.msra.mxu0 0
    %179 = vmatprep.subr.bf16.mxu0 0
    %180 = vmatpush1.bf16.msra.mxu0 0
    %181 = vmatprep.subr.bf16.mxu0 0
    %182 = vmatpush1.bf16.msra.mxu0 0
    %183 = vmatprep.subr.bf16.mxu0 0
    %184 = vmatpush1.bf16.msra.mxu0 0
    %185 = vmatprep.subr.bf16.mxu0 0
    %186 = vmatpush1.bf16.msra.mxu0 0
    %187 = vmatprep.subr.bf16.mxu0 0
    %188 = vmatpush1.bf16.msra.mxu0 0
    %189 = vmatprep.subr.bf16.mxu0 0
    %190 = vmatpush1.bf16.msra.mxu0 0
    %191 = vmatprep.subr.bf16.mxu0 0
    %192 = vmatpush1.bf16.msra.mxu0 0
    %193 = vmatprep.subr.bf16.mxu0 0
    %194 = vmatpush1.bf16.msra.mxu0 0
    %195 = vmatprep.mubr.bf16.mxu0 0
    %196 = vmatmul.mubr.bf16.gmra.mrb[0].mxu0 %v161
    %v197 = vpop.f32.mrb[0].mxu0
    %v198 = vadd.f32 %v147, %v197
    %v199 = vpop.f32.mrb[0].mxu0
    %v200 = vpop.f32.mrb[0].mxu0
    %v201 = vadd.f32 %v152, %v200
    %v202 = vpop.f32.mrb[0].mxu0
    %203 = vdwg.mxu0
    %vm204 = vcmp.gt.f32.partialorder %v198, 0.0
    %vm205 = vcmp.gt.f32.partialorder %v201, 0.0
    %v206 = vmul.f32 %v198, 0.2
    %v207 = vmul.f32 %v201, 0.2
    %v208 = vsel %vm204, %v198, %v206
    %v209 = vsel %vm205, %v201, %v207
    %v210 = vld [vmem:[%s5] sm:$0x3]
    %v211 = vpack.c.bf16 %v209, %v208
    %v212 = vld [vmem:[%s6] sm:$0xf]
    %214 = vset.pattern.permute.xlu0 0
    %215 = vperm.xlu0 %214, %v212
    %v216 = vpop.permute.xlu0 %215
    %vm218 = vcmask 130048
    %v220 = vsel %vm218, %v210, 0
    %222 = vmatprep.subr.bf16.mxu0 0
    %223 = vmatpush1.bf16.msra.mxu0 %v211
    %224 = vmatprep.subr.bf16.mxu0 0
    %225 = vmatpush1.bf16.msra.mxu0 0
    %226 = vmatprep.subr.bf16.mxu0 0
    %227 = vmatpush1.bf16.msra.mxu0 0
    %228 = vmatprep.subr.bf16.mxu0 0
    %229 = vmatpush1.bf16.msra.mxu0 0
    %230 = vmatprep.subr.bf16.mxu0 0
    %231 = vmatpush1.bf16.msra.mxu0 0
    %232 = vmatprep.subr.bf16.mxu0 0
    %233 = vmatpush1.bf16.msra.mxu0 0
    %234 = vmatprep.subr.bf16.mxu0 0
    %235 = vmatpush1.bf16.msra.mxu0 0
    %236 = vmatprep.subr.bf16.mxu0 0
    %237 = vmatpush1.bf16.msra.mxu0 0
    %238 = vmatprep.subr.bf16.mxu0 0
    %239 = vmatpush1.bf16.msra.mxu0 0
    %240 = vmatprep.subr.bf16.mxu0 0
    %241 = vmatpush1.bf16.msra.mxu0 0
    %242 = vmatprep.subr.bf16.mxu0 0
    %243 = vmatpush1.bf16.msra.mxu0 0
    %244 = vmatprep.subr.bf16.mxu0 0
    %245 = vmatpush1.bf16.msra.mxu0 0
    %246 = vmatprep.subr.bf16.mxu0 0
    %247 = vmatpush1.bf16.msra.mxu0 0
    %248 = vmatprep.subr.bf16.mxu0 0
    %249 = vmatpush1.bf16.msra.mxu0 0
    %250 = vmatprep.subr.bf16.mxu0 0
    %251 = vmatpush1.bf16.msra.mxu0 0
    %252 = vmatprep.subr.bf16.mxu0 0
    %253 = vmatpush1.bf16.msra.mxu0 0
    %254 = vmatprep.mubr.bf16.mxu0 0
    %255 = vmatmul.mubr.bf16.gmra.mrb[0].mxu0 %v220
    %v256 = vpop.f32.mrb[0].mxu0
    %v257 = vadd.f32 %v216, %v256
    %v258 = vpop.f32.mrb[0].mxu0
    %v259 = vpop.f32.mrb[0].mxu0
    %v260 = vpop.f32.mrb[0].mxu0
    %261 = vdwg.mxu0
    %vm262 = vcmask 60416
    %263 = vst.msk [vmem:[#allocation2] sm:$0xf] %vm262, %v257
    // Predicated region
    $region30: #{prsnet_quaternion_predictor.1} parent=1 // pred_check
      _
    $region31: #{prsnet_quaternion_predictor.1} parent=1 // pred_check_branch
      %265 = sbr.rel (0) target = $region33
    $region32: #{prsnet_quaternion_predictor.1} parent=1 // pred_region
      %s267 = ssub.s32 64, 64
      %268 = vsyncadd [#allocation3], %s267
      %s270 = sshll.u32 [#allocation2], 4
      %s271 = int_to_ptr.vmem [resolvable:$true] %s270
      %273 = dma.vmem_to_hbm [thread:$0]  %s271, 64, %s7, [#allocation3]
    $region33: #{prsnet_quaternion_predictor.1} parent=1 // pred_fallthru
      _
    // Predicated region
    $region34: #{prsnet_quaternion_predictor.1} parent=1 // pred_check
      _
    $region35: #{prsnet_quaternion_predictor.1} parent=1 // pred_check_branch
      %275 = sbr.rel (0) target = $region37
    $region36: #{prsnet_quaternion_predictor.1} parent=1 // pred_region
      %276 = dma.done [#allocation3], 64
    $region37: #{prsnet_quaternion_predictor.1} parent=1 // pred_fallthru
      _
    %277 = vsyncpa [#allocation3], 1

</llo_original>
